<compile_context>
chip_gen: v7x
topology: tpu7x:2x2x1
jax: 0.10.0
libtpu: 0.0.40
codegen_flags: <defaults>
</compile_context>

<pallas_src>
import jax
import jax.numpy as jnp
from jax import lax
from jax.experimental import pallas as pl
from jax.experimental.pallas import tpu as pltpu


def _round_up(v, m):
    return ((v + m - 1) // m) * m


def _derive_spatial_tile(M, Cin, Cout, N, itemsize, *,
                         working_set_bytes=8 * 1024 * 1024,
                         min_parallel_blocks=4,
                         max_tile=65536):
    """Pick the spatial (lane) tile TM.

    Sized so that double-buffered (x + out) tiles fit in `working_set_bytes`,
    accounting for sublane padding of the channel dims, then capped so the
    parallel grid still has enough blocks for v7x's two TensorCores.
    """
    sublane = max(8, 32 // max(itemsize, 1))      # 8 rows for f32, 16 for bf16
    cin_p = _round_up(Cin, sublane)
    cout_p = _round_up(Cout, sublane)
    per_col = 2 * itemsize * (cin_p + cout_p)     # 2x: Pallas double-buffering
    tm = working_set_bytes // per_col
    tm = min(tm, max_tile)
    tm = max(128, (tm // 128) * 128)
    if tm >= M:
        tm = M
    # v7x megacore: keep >= min_parallel_blocks grid blocks when M allows it.
    if M > 128 and N * pl.cdiv(M, tm) < min_parallel_blocks:
        per_batch = -(-min_parallel_blocks // N)          # ceil
        cap = _round_up(-(-M // per_batch), 128)          # ceil, 128-aligned
        tm = min(tm, cap)
    return tm


# ----------------------------- Pallas kernel ------------------------------ #
def _pointwise_conv_sigmoid_kernel(x_ref, w_ref, b_ref, o_ref):
    # x_ref: (Cin, TM)   input tile  (channels on sublanes, spatial on lanes)
    # w_ref: (Cout, Cin) full 1x1x1 conv weight (resident in VMEM)
    # b_ref: (Cout, 1)   bias (f32, resident)
    # o_ref: (Cout, TM)  output tile -- lane-dense stores
    z = jnp.dot(w_ref[...], x_ref[...], preferred_element_type=jnp.float32)
    z = z + b_ref[...]
    # sigmoid(z) = 0.5 * (1 + tanh(z / 2)) : EUP tanh, no VALU divide.
    o_ref[...] = (0.5 * (jnp.tanh(0.5 * z) + 1.0)).astype(o_ref.dtype)


# -------------------------------- outConv --------------------------------- #
def out_conv_forward(x, weight, bias, *, spatial_tile=None,
                     vmem_working_set_bytes=8 * 1024 * 1024):
    """Conv3d(in_ch, out_ch, kernel_size=1) followed by Sigmoid.

    x:      (N, Cin, D, H, W)   (f32 or bf16)
    weight: (Cout, Cin, 1, 1, 1)
    bias:   (Cout,)
    returns (N, Cout, D, H, W)  in x.dtype
    """
    N, Cin, D, H, W = x.shape
    Cout = weight.shape[0]
    M = D * H * W
    itemsize = jnp.dtype(x.dtype).itemsize

    # Free reshapes (no data movement): channels-first, spatial flattened onto
    # the lane dimension.
    x2 = x.reshape(N, Cin, M)
    w2 = weight.reshape(Cout, Cin).astype(x.dtype)
    b2 = bias.reshape(Cout, 1).astype(jnp.float32)

    if spatial_tile is None:
        tm = _derive_spatial_tile(M, Cin, Cout, N, itemsize,
                                  working_set_bytes=vmem_working_set_bytes)
    else:
        tm = M if spatial_tile >= M else max(128, (spatial_tile // 128) * 128)

    grid = (N, pl.cdiv(M, tm))

    flops = 2 * N * M * Cin * Cout
    bytes_accessed = (itemsize * (N * Cin * M + N * Cout * M + Cout * Cin)
                      + 4 * Cout)

    out = pl.pallas_call(
        _pointwise_conv_sigmoid_kernel,
        out_shape=jax.ShapeDtypeStruct((N, Cout, M), x.dtype),
        grid_spec=pl.GridSpec(
            grid=grid,
            in_specs=[
                # x tile: (Cin, tm); walks contiguous HBM along the fast axis.
                pl.BlockSpec((None, Cin, tm), lambda n, i: (n, 0, i)),
                # weight / bias: constant block index -> stay resident, no
                # per-step re-DMA (keep this ordering; see review).
                pl.BlockSpec((Cout, Cin), lambda n, i: (0, 0)),
                pl.BlockSpec((Cout, 1), lambda n, i: (0, 0)),
            ],
            out_specs=pl.BlockSpec((None, Cout, tm), lambda n, i: (n, 0, i)),
        ),
        compiler_params=pltpu.CompilerParams(
            dimension_semantics=("parallel", "parallel"),
            vmem_limit_bytes=32 * 1024 * 1024,
        ),
        cost_estimate=pl.CostEstimate(
            flops=flops,
            transcendentals=N * M * Cout,
            bytes_accessed=bytes_accessed,
        ),
    )(x2, w2, b2)

    # Free reshape back to NCDHW.
    return out.reshape(N, Cout, D, H, W)


# ---------------------------------- main ----------------------------------- #
if __name__ == "__main__":
    key = jax.random.PRNGKey(0)
    k1, k2, k3 = jax.random.split(key, 3)

    N, in_ch, out_ch = 2, 4, 2
    D = H = W = 16

    x = jax.random.normal(k1, (N, in_ch, D, H, W), dtype=jnp.float32)

    # deterministic params (PyTorch-style uniform bound 1/sqrt(fan_in))
    fan_in = in_ch * 1 * 1 * 1
    bound = 1.0 / jnp.sqrt(jnp.float32(fan_in))
    weight = jax.random.uniform(k2, (out_ch, in_ch, 1, 1, 1),
                                minval=-bound, maxval=bound, dtype=jnp.float32)
    bias = jax.random.uniform(k3, (out_ch,),
                              minval=-bound, maxval=bound, dtype=jnp.float32)

    out = jax.jit(out_conv_forward)(x, weight, bias)
    out = jax.block_until_ready(out)

    # sanity check against XLA's conv + sigmoid
    ref = lax.conv_general_dilated(
        x, weight,
        window_strides=(1, 1, 1),
        padding=[(0, 0), (0, 0), (0, 0)],
        dimension_numbers=("NCDHW", "OIDHW", "NCDHW"),
    ) + bias.reshape(1, out_ch, 1, 1, 1)
    ref = jax.nn.sigmoid(ref)

    assert out.shape == (N, out_ch, D, H, W), out.shape
    assert jnp.allclose(out, ref, atol=1e-4, rtol=1e-4), float(
        jnp.max(jnp.abs(out - ref)))

    print("KERNEL_OK")
</pallas_src>

<mosaic_0001>
module attributes {stable_mosaic.version = 11 : i64} {
  func.func @_pointwise_conv_sigmoid_kernel(%arg0: i32, %arg1: i32, %arg2: memref<1x4x2048xf32, #tpu.memory_space<vmem>>, %arg3: memref<2x4xf32, #tpu.memory_space<vmem>>, %arg4: memref<2x1xf32, #tpu.memory_space<vmem>>, %arg5: memref<1x2x2048xf32, #tpu.memory_space<vmem>>) attributes {dimension_semantics = [#tpu.dimension_semantics<parallel>, #tpu.dimension_semantics<parallel>], iteration_bounds = array<i64: 2, 2>, scalar_prefetch = 0 : i64, scratch_operands = 0 : i64, tpu.core_type = #tpu.core_type<tc>, window_params = [{transform_indices = @transform_0, window_bounds = array<i64: 1, 4, 2048>}, {pipeline_mode = #tpu.pipeline_mode<synchronous>, transform_indices = @transform_1, window_bounds = array<i64: 2, 4>}, {pipeline_mode = #tpu.pipeline_mode<synchronous>, transform_indices = @transform_2, window_bounds = array<i64: 2, 1>}, {transform_indices = @transform_3, window_bounds = array<i64: 1, 2, 2048>}]} {
    %c0 = arith.constant 0 : index
    %c0_0 = arith.constant 0 : index
    %0 = vector.load %arg3[%c0, %c0_0] : memref<2x4xf32, #tpu.memory_space<vmem>>, vector<2x4xf32>
    %c0_1 = arith.constant 0 : index
    %c0_2 = arith.constant 0 : index
    %c0_3 = arith.constant 0 : index
    %1 = vector.load %arg2[%c0_1, %c0_2, %c0_3] : memref<1x4x2048xf32, #tpu.memory_space<vmem>>, vector<1x4x2048xf32>
    %2 = vector.shape_cast %1 : vector<1x4x2048xf32> to vector<4x2048xf32>
    %cst = arith.constant dense<0.000000e+00> : vector<2x2048xf32>
    %3 = tpu.matmul %0, %2, %cst {dimension_numbers = #tpu.dot_dimension_numbers<[1], [0], [0], [1], [0, 0, 1, 1], [], []>} : vector<2x4xf32>, vector<4x2048xf32>, vector<2x2048xf32> -> vector<2x2048xf32>
    %c0_4 = arith.constant 0 : index
    %c0_5 = arith.constant 0 : index
    %4 = vector.load %arg4[%c0_4, %c0_5] : memref<2x1xf32, #tpu.memory_space<vmem>>, vector<2x1xf32>
    %5 = vector.broadcast %4 : vector<2x1xf32> to vector<2x2048xf32>
    %6 = arith.addf %3, %5 : vector<2x2048xf32>
    %cst_6 = arith.constant 5.000000e-01 : f32
    %7 = vector.broadcast %cst_6 : f32 to vector<2x2048xf32>
    %8 = arith.mulf %7, %6 : vector<2x2048xf32>
    %9 = math.tanh %8 : vector<2x2048xf32>
    %cst_7 = arith.constant 1.000000e+00 : f32
    %10 = vector.broadcast %cst_7 : f32 to vector<2x2048xf32>
    %11 = arith.addf %9, %10 : vector<2x2048xf32>
    %cst_8 = arith.constant 5.000000e-01 : f32
    %12 = vector.broadcast %cst_8 : f32 to vector<2x2048xf32>
    %13 = arith.mulf %12, %11 : vector<2x2048xf32>
    %c0_9 = arith.constant 0 : index
    %c0_10 = arith.constant 0 : index
    %c0_11 = arith.constant 0 : index
    %14 = vector.load %arg5[%c0_9, %c0_10, %c0_11] : memref<1x2x2048xf32, #tpu.memory_space<vmem>>, vector<1x2x2048xf32>
    %15 = vector.shape_cast %14 : vector<1x2x2048xf32> to vector<2x2048xf32>
    %16 = vector.shape_cast %13 : vector<2x2048xf32> to vector<1x2x2048xf32>
    tpu.vector_store %arg5[%c0_9, %c0_10, %c0_11], %16 {strides = array<i32>} : memref<1x2x2048xf32, #tpu.memory_space<vmem>>, vector<1x2x2048xf32>,
    return
  }
  func.func @transform_0(%arg0: i32, %arg1: i32) -> (i32, i32, i32) {
    %c0_i32 = arith.constant 0 : i32
    %c0_i32_0 = arith.constant 0 : i32
    return %arg0, %c0_i32, %arg1 : i32, i32, i32
  }
  func.func @transform_1(%arg0: i32, %arg1: i32) -> (i32, i32) {
    %c0_i32 = arith.constant 0 : i32
    %c0_i32_0 = arith.constant 0 : i32
    %c0_i32_1 = arith.constant 0 : i32
    return %c0_i32, %c0_i32_0 : i32, i32
  }
  func.func @transform_2(%arg0: i32, %arg1: i32) -> (i32, i32) {
    %c0_i32 = arith.constant 0 : i32
    %c0_i32_0 = arith.constant 0 : i32
    %c0_i32_1 = arith.constant 0 : i32
    return %c0_i32, %c0_i32_0 : i32, i32
  }
  func.func @transform_3(%arg0: i32, %arg1: i32) -> (i32, i32, i32) {
    %c0_i32 = arith.constant 0 : i32
    %c0_i32_0 = arith.constant 0 : i32
    return %arg0, %c0_i32, %arg1 : i32, i32, i32
  }
}

</mosaic_0001>

<llo_original>
// kernel: out_conv_forward.1
$region0: #{out_conv_forward.1}
  #allocation0 [shape = 'u32[]', space=smem, size = 0x4, offset = 0x4, fixed_abs, tag = 'smem constant byte address 0x4 - core index']
  #allocation1 [shape = 'u32[144,128]{1,0:T(1,128)}', space=vmem, size = 0x12000, scoped, tag = 'internal scratch']
  %s0 = inlined_call_operand.vmem [shape: f32[2,4,4096], index: 0, kind: input, shape index: {}]
  %s1 = inlined_call_operand.vmem [shape: f32[2,4], index: 1, kind: input, shape index: {}]
  %s2 = inlined_call_operand.vmem [shape: f32[2,1], index: 2, kind: input, shape index: {}]
  %s3 = inlined_call_operand.vmem [shape: f32[2,2,4096], index: 3, kind: output, shape index: {}]
  %s4 = sld [smem:[#allocation0]]
  $region45: #{out_conv_forward.1} parent=0
    _
  %s6 = ssub.s32 1, %s4
  %s7 = scalar_select 0, %s6, %s4
  loop: start=0, step=1, limit=6
  $region2: #{out_conv_forward.1} parent=0 // loop_pre_header
    _
  $region3: #{out_conv_forward.1} parent=0 // loop_header
    %s9 = sphi 0, %s13
    %p10 = scmp.ge.s32.totalorder %s9, 6
    %s16 = sphi 0, %s28
    %s17 = sphi 0, %s24
    %s18 = sphi 0, %s16
    %s19 = sphi 0, %s17
    %s20 = sphi 0, %s18
    %s21 = sphi 0, %s19
    %s33 = sphi 0, %s35
    %s36 = sphi 0, %s33
    %s37 = sphi 0, %s36
    %s53 = sphi 0, %s37
    %s57 = sphi 0, %s57
    %s59 = sphi 0, %s57
    %s60 = sphi 0, %s59
    %s74 = sphi 0, %s60
    %s78 = sphi 0, %s78
    %s80 = sphi 0, %s78
    %s81 = sphi 0, %s80
    %s95 = sphi 0, %s81
    %s103 = sphi 0, %s105
    %s106 = sphi 0, %s103
    %s107 = sphi 0, %s106
    %s123 = sphi 0, %s107
  $region4: #{out_conv_forward.1} parent=0 // loop_header_branch
    %12 = sbr.rel (%p10) target = $region8
  $region5: #{out_conv_forward.1} parent=0 // loop_body
    %s14 = ssub.s32 %s9, 1
    %s15 = ssub.s32 %s9, 2
    %s22 = sadd.s32 1, %s17
    %p23 = scmp.ge.s32.totalorder %s22, 2
    %s24 = scalar_select %p23, 0, %s22
    %s25 = sadd.s32 1, %s16
    %s26 = scalar_select %p23, %s25, %s16
    %p27 = scmp.ge.s32.totalorder %s26, 2
    %s28 = scalar_select %p27, 0, %s26
    %s29 = ssub.s32 %s16, %s28
    %s30 = ssub.s32 %s17, %s24
    %s31 = sor.u32 %s29, %s30
    %p32 = scmp.eq.s32.totalorder %s31, 0
    %s34 = sadd.s32 %s33, 1
    %s35 = scalar_select %p32, %s33, %s34
    %p38 = pneg %p32
    %p39 = scmp.eq.s32.totalorder %s9, 3
    %p40 = por %p38, %p39
    %p41 = scmp.ne.s32.totalorder %s33, %s36
    %p42 = scmp.eq.s32.totalorder %s9, 0
    %p43 = por %p41, %p42
    %p44 = scmp.ne.s32.totalorder %s33, %s36
    %p45 = scmp.eq.s32.totalorder %s14, 3
    %p46 = por %p44, %p45
    %p47 = scmp.ne.s32.totalorder %s36, %s37
    %p48 = scmp.eq.s32.totalorder %s14, 0
    %p49 = por %p47, %p48
    %p50 = scmp.ne.s32.totalorder %s36, %s37
    %p51 = scmp.eq.s32.totalorder %s15, 3
    %p52 = por %p50, %p51
    %p54 = scmp.ne.s32.totalorder %s37, %s53
    %p55 = scmp.eq.s32.totalorder %s15, 0
    %p56 = por %p54, %p55
    %s58 = sadd.s32 %s57, 1
    %p61 = scmp.eq.s32.totalorder %s9, 3
    %p62 = scmp.ne.s32.totalorder %s57, %s59
    %p63 = scmp.eq.s32.totalorder %s9, 0
    %p64 = por %p62, %p63
    %p65 = scmp.ne.s32.totalorder %s57, %s59
    %p66 = scmp.eq.s32.totalorder %s14, 3
    %p67 = por %p65, %p66
    %p68 = scmp.ne.s32.totalorder %s59, %s60
    %p69 = scmp.eq.s32.totalorder %s14, 0
    %p70 = por %p68, %p69
    %p71 = scmp.ne.s32.totalorder %s59, %s60
    %p72 = scmp.eq.s32.totalorder %s15, 3
    %p73 = por %p71, %p72
    %p75 = scmp.ne.s32.totalorder %s60, %s74
    %p76 = scmp.eq.s32.totalorder %s15, 0
    %p77 = por %p75, %p76
    %s79 = sadd.s32 %s78, 1
    %p82 = scmp.eq.s32.totalorder %s9, 3
    %p83 = scmp.ne.s32.totalorder %s78, %s80
    %p84 = scmp.eq.s32.totalorder %s9, 0
    %p85 = por %p83, %p84
    %p86 = scmp.ne.s32.totalorder %s78, %s80
    %p87 = scmp.eq.s32.totalorder %s14, 3
    %p88 = por %p86, %p87
    %p89 = scmp.ne.s32.totalorder %s80, %s81
    %p90 = scmp.eq.s32.totalorder %s14, 0
    %p91 = por %p89, %p90
    %p92 = scmp.ne.s32.totalorder %s80, %s81
    %p93 = scmp.eq.s32.totalorder %s15, 3
    %p94 = por %p92, %p93
    %p96 = scmp.ne.s32.totalorder %s81, %s95
    %p97 = scmp.eq.s32.totalorder %s15, 0
    %p98 = por %p96, %p97
    %s99 = ssub.s32 %s16, %s28
    %s100 = ssub.s32 %s17, %s24
    %s101 = sor.u32 %s99, %s100
    %p102 = scmp.eq.s32.totalorder %s101, 0
    %s104 = sadd.s32 %s103, 1
    %s105 = scalar_select %p102, %s103, %s104
    %p108 = pneg %p102
    %p109 = scmp.eq.s32.totalorder %s9, 3
    %p110 = por %p108, %p109
    %p111 = scmp.ne.s32.totalorder %s103, %s106
    %p112 = scmp.eq.s32.totalorder %s9, 0
    %p113 = por %p111, %p112
    %p114 = scmp.ne.s32.totalorder %s103, %s106
    %p115 = scmp.eq.s32.totalorder %s14, 3
    %p116 = por %p114, %p115
    %p117 = scmp.ne.s32.totalorder %s106, %s107
    %p118 = scmp.eq.s32.totalorder %s14, 0
    %p119 = por %p117, %p118
    %p120 = scmp.ne.s32.totalorder %s106, %s107
    %p121 = scmp.eq.s32.totalorder %s15, 3
    %p122 = por %p120, %p121
    %p124 = scmp.ne.s32.totalorder %s107, %s123
    %p125 = scmp.eq.s32.totalorder %s15, 0
    %p126 = por %p124, %p125
    %p127 = scmp.le.s32.totalorder 1, %s9
    %p128 = scmp.lt.s32.totalorder %s9, 5
    %p129 = pnand %p127, %p128
    %p130 = pneg %p129
    // Predicated region
    $region9: #{out_conv_forward.1} parent=5 // pred_check
      _
    $region10: #{out_conv_forward.1} parent=5 // pred_check_branch
      %132 = sbr.rel (%p129) target = $region12
    $region11: #{out_conv_forward.1} parent=5 // pred_region
      %s133 = ssub.s32 %s9, 1
      // Predicated region
      $region13: #{out_conv_forward.1} parent=11 // pred_check
        %p134 = pneg %p70
      $region14: #{out_conv_forward.1} parent=11 // pred_check_branch
        %136 = sbr.rel (%p134) target = $region16
      $region15: #{out_conv_forward.1} parent=11 // pred_region
        _
      $region16: #{out_conv_forward.1} parent=11 // pred_fallthru
        _
      // Predicated region
      $region17: #{out_conv_forward.1} parent=11 // pred_check
        %p137 = pneg %p91
      $region18: #{out_conv_forward.1} parent=11 // pred_check_branch
        %139 = sbr.rel (%p137) target = $region20
      $region19: #{out_conv_forward.1} parent=11 // pred_region
        _
      $region20: #{out_conv_forward.1} parent=11 // pred_fallthru
        _
    $region12: #{out_conv_forward.1} parent=5 // pred_fallthru
      _
    %p140 = scmp.lt.s32.totalorder %s9, 4
    // Predicated region
    $region21: #{out_conv_forward.1} parent=5 // pred_check
      %p141 = pneg %p140
    $region22: #{out_conv_forward.1} parent=5 // pred_check_branch
      %143 = sbr.rel (%p141) target = $region24
    $region23: #{out_conv_forward.1} parent=5 // pred_region
      // Predicated region
      $region25: #{out_conv_forward.1} parent=23 // pred_check
        %p144 = pneg %p43
      $region26: #{out_conv_forward.1} parent=23 // pred_check_branch
        %146 = sbr.rel (%p144) target = $region28
      $region27: #{out_conv_forward.1} parent=23 // pred_region
        %s147 = smul.u32 16, %s17
        %p148 = scmp.lt.s32.totalorder %s16, 1
        %s149 = scalar_select %p148, %s16, 1
        %p150 = scmp.lt.s32.totalorder %s147, 31
        %s151 = scalar_select %p150, %s147, 31
        %s152 = smul.addr %s149, 32
        %s153 = sadd.s32 %s151, %s152
        %s154 = smul.addr %s153, 4
        %s155 = scalar_lea.vmem %s0, %s154
        %s156 = smul.u32 16, %s17
      $region28: #{out_conv_forward.1} parent=23 // pred_fallthru
        _
    $region24: #{out_conv_forward.1} parent=5 // pred_fallthru
      _
    %p157 = scmp.le.s32.totalorder 1, %s9
    %p158 = scmp.lt.s32.totalorder %s9, 5
    %p159 = pnand %p157, %p158
    %p160 = pneg %p159
    // Predicated region
    $region29: #{out_conv_forward.1} parent=5 // pred_check
      _
    $region30: #{out_conv_forward.1} parent=5 // pred_check_branch
      %162 = sbr.rel (%p159) target = $region32
    $region31: #{out_conv_forward.1} parent=5 // pred_region
      %s163 = ssub.s32 %s9, 1
      %s164 = smul.u32 16, %s19
      %p165 = scmp.lt.s32.totalorder %s18, 1
      %s166 = scalar_select %p165, %s18, 1
      %p167 = scmp.lt.s32.totalorder %s164, 31
      %s168 = scalar_select %p167, %s164, 31
      %s169 = smul.addr %s166, 32
      %s170 = sadd.s32 %s168, %s169
      %s171 = smul.addr %s170, 4
      %s172 = scalar_lea.vmem %s0, %s171
      %p173 = pneg %p49
      %p174 = pneg %p46
      %p175 = pneg %p70
      %p176 = pneg %p67
      %p177 = pneg %p91
      %p178 = pneg %p88
      %p179 = pneg %p119
      %p180 = pneg %p116
      %s181 = smul.u32 16, %s19
      %p182 = scmp.lt.s32.totalorder %s18, 1
      %s183 = scalar_select %p182, %s18, 1
      %p184 = scmp.lt.s32.totalorder %s181, 31
      %s185 = scalar_select %p184, %s181, 31
      %s186 = smul.addr %s183, 32
      %s187 = sadd.s32 %s185, %s186
      %s188 = smul.addr %s187, 2
      %s189 = scalar_lea.vmem %s3, %s188
      %s190 = smul.u32 16, %s19
      %p191 = scmp.lt.s32.totalorder %s18, 1
      %s192 = scalar_select %p191, %s18, 1
      %p193 = scmp.lt.s32.totalorder %s190, 31
      %s194 = scalar_select %p193, %s190, 31
      %s195 = smul.addr %s192, 32
      %s196 = sadd.s32 %s194, %s195
      %s197 = smul.addr %s196, 4
      %s198 = scalar_lea.vmem %s0, %s197
      %s199 = smul.u32 16, %s19
      %s200 = smul.u32 16, %s19
      %p201 = scmp.lt.s32.totalorder %s18, 1
      %s202 = scalar_select %p201, %s18, 1
      %p203 = scmp.lt.s32.totalorder %s200, 31
      %s204 = scalar_select %p203, %s200, 31
      %s205 = smul.addr %s202, 32
      %s206 = sadd.s32 %s204, %s205
      %s207 = smul.addr %s206, 2
      %s208 = scalar_lea.vmem %s3, %s207
      %s209 = smul.u32 16, %s19
      %v210 = vld [vmem:[%s1] sm:$0x3]
      %v211 = vld [vmem:[%s198] sm:$0xff]
      %v212 = vld [vmem:[%s198 + $0x8] sm:$0xff]
      %v213 = vld [vmem:[%s198 + $0x10] sm:$0xff]
      %v214 = vld [vmem:[%s198 + $0x18] sm:$0xff]
      %v215 = vld [vmem:[%s198 + $0x20] sm:$0xff]
      %v216 = vld [vmem:[%s198 + $0x28] sm:$0xff]
      %v217 = vld [vmem:[%s198 + $0x30] sm:$0xff]
      %v218 = vld [vmem:[%s198 + $0x38] sm:$0xff]
      %v219 = vld [vmem:[%s2] sm:$0x3]
      %221 = vset.pattern.permute.xlu0 0
      %222 = vperm.xlu0 %221, %v219
      %v223 = vpop.permute.xlu0 %222
      %v233 = vcombine.high %v211, %v211
      %v234 = vcombine.high %v212, %v212
      %v235 = vcombine.high %v213, %v213
      %v236 = vcombine.high %v214, %v214
      %v237 = vcombine.high %v215, %v215
      %v238 = vcombine.high %v216, %v216
      %v239 = vcombine.high %v217, %v217
      %v240 = vcombine.high %v218, %v218
      %vm241 = vcmask 31744
      %v243 = vsel %vm241, %v210, 0
      %vm245 = vcmask 1043456
      %v246 = vsel %vm245, %v211, 0
      %v248 = vsel %vm245, %v233, 0
      %v250 = vsel %vm245, %v212, 0
      %v252 = vsel %vm245, %v234, 0
      %v254 = vsel %vm245, %v213, 0
      %v256 = vsel %vm245, %v235, 0
      %v258 = vsel %vm245, %v214, 0
      %v260 = vsel %vm245, %v236, 0
      %v262 = vsel %vm245, %v215, 0
      %v264 = vsel %vm245, %v237, 0
      %v266 = vsel %vm245, %v216, 0
      %v268 = vsel %vm245, %v238, 0
      %v270 = vsel %vm245, %v217, 0
      %v272 = vsel %vm245, %v239, 0
      %v274 = vsel %vm245, %v218, 0
      %v276 = vsel %vm245, %v240, 0
      %278 = vmatprep.subr.mxu0 %v248
      %279 = vmatpush1.msra.mxu0 %v246
      %280 = vmatprep.subr.mxu0 0.0
      %281 = vmatpush1.msra.mxu0 0.0
      %282 = vmatprep.subr.mxu0 0.0
      %283 = vmatpush1.msra.mxu0 0.0
      %284 = vmatprep.subr.mxu0 0.0
      %285 = vmatpush1.msra.mxu0 0.0
      %286 = vmatprep.subr.mxu0 0.0
      %287 = vmatpush1.msra.mxu0 0.0
      %288 = vmatprep.subr.mxu0 0.0
      %289 = vmatpush1.msra.mxu0 0.0
      %290 = vmatprep.subr.mxu0 0.0
      %291 = vmatpush1.msra.mxu0 0.0
      %292 = vmatprep.subr.mxu0 0.0
      %293 = vmatpush1.msra.mxu0 0.0
      %294 = vmatprep.subr.mxu0 0.0
      %295 = vmatpush1.msra.mxu0 0.0
      %296 = vmatprep.subr.mxu0 0.0
      %297 = vmatpush1.msra.mxu0 0.0
      %298 = vmatprep.subr.mxu0 0.0
      %299 = vmatpush1.msra.mxu0 0.0
      %300 = vmatprep.subr.mxu0 0.0
      %301 = vmatpush1.msra.mxu0 0.0
      %302 = vmatprep.subr.mxu0 0.0
      %303 = vmatpush1.msra.mxu0 0.0
      %304 = vmatprep.subr.mxu0 0.0
      %305 = vmatpush1.msra.mxu0 0.0
      %306 = vmatprep.subr.mxu0 0.0
      %307 = vmatpush1.msra.mxu0 0.0
      %308 = vmatprep.subr.mxu0 0.0
      %309 = vmatpush1.msra.mxu0 0.0
      %310 = vmatprep.subr.mxu0 0.0
      %311 = vmatpush1.msra.mxu0 0.0
      %312 = vmatprep.subr.mxu0 0.0
      %313 = vmatpush1.msra.mxu0 0.0
      %314 = vmatprep.subr.mxu0 0.0
      %315 = vmatpush1.msra.mxu0 0.0
      %316 = vmatprep.subr.mxu0 0.0
      %317 = vmatpush1.msra.mxu0 0.0
      %318 = vmatprep.subr.mxu0 0.0
      %319 = vmatpush1.msra.mxu0 0.0
      %320 = vmatprep.subr.mxu0 0.0
      %321 = vmatpush1.msra.mxu0 0.0
      %322 = vmatprep.subr.mxu0 0.0
      %323 = vmatpush1.msra.mxu0 0.0
      %324 = vmatprep.subr.mxu0 0.0
      %325 = vmatpush1.msra.mxu0 0.0
      %326 = vmatprep.subr.mxu0 0.0
      %327 = vmatpush1.msra.mxu0 0.0
      %328 = vmatprep.subr.mxu0 0.0
      %329 = vmatpush1.msra.mxu0 0.0
      %330 = vmatprep.subr.mxu0 0.0
      %331 = vmatpush1.msra.mxu0 0.0
      %332 = vmatprep.subr.mxu0 0.0
      %333 = vmatpush1.msra.mxu0 0.0
      %334 = vmatprep.subr.mxu0 0.0
      %335 = vmatpush1.msra.mxu0 0.0
      %336 = vmatprep.subr.mxu0 0.0
      %337 = vmatpush1.msra.mxu0 0.0
      %338 = vmatprep.subr.mxu0 0.0
      %339 = vmatpush1.msra.mxu0 0.0
      %340 = vmatprep.subr.mxu0 0.0
      %341 = vmatpush1.msra.mxu0 0.0
      %342 = vmatprep.mubr.f32.mxu0 0.0
      %343 = vmatmul.mubr.f32.gmra.mrb[0].mxu0 %v243
      %v344 = vpop.f32.mrb[0].mxu0
      %v345 = vadd.f32 %v223, %v344
      %v346 = vpop.f32.mrb[0].mxu0
      %v347 = vadd.f32 %v223, %v346
      %348 = vdwg.mxu0
      %349 = vmatprep.subr.mxu0 %v252
      %350 = vmatpush1.msra.mxu0 %v250
      %351 = vmatprep.subr.mxu0 0.0
      %352 = vmatpush1.msra.mxu0 0.0
      %353 = vmatprep.subr.mxu0 0.0
      %354 = vmatpush1.msra.mxu0 0.0
      %355 = vmatprep.subr.mxu0 0.0
      %356 = vmatpush1.msra.mxu0 0.0
      %357 = vmatprep.subr.mxu0 0.0
      %358 = vmatpush1.msra.mxu0 0.0
      %359 = vmatprep.subr.mxu0 0.0
      %360 = vmatpush1.msra.mxu0 0.0
      %361 = vmatprep.subr.mxu0 0.0
      %362 = vmatpush1.msra.mxu0 0.0
      %363 = vmatprep.subr.mxu0 0.0
      %364 = vmatpush1.msra.mxu0 0.0
      %365 = vmatprep.subr.mxu0 0.0
      %366 = vmatpush1.msra.mxu0 0.0
      %367 = vmatprep.subr.mxu0 0.0
      %368 = vmatpush1.msra.mxu0 0.0
      %369 = vmatprep.subr.mxu0 0.0
      %370 = vmatpush1.msra.mxu0 0.0
      %371 = vmatprep.subr.mxu0 0.0
      %372 = vmatpush1.msra.mxu0 0.0
      %373 = vmatprep.subr.mxu0 0.0
      %374 = vmatpush1.msra.mxu0 0.0
      %375 = vmatprep.subr.mxu0 0.0
      %376 = vmatpush1.msra.mxu0 0.0
      %377 = vmatprep.subr.mxu0 0.0
      %378 = vmatpush1.msra.mxu0 0.0
      %379 = vmatprep.subr.mxu0 0.0
      %380 = vmatpush1.msra.mxu0 0.0
      %381 = vmatprep.subr.mxu0 0.0
      %382 = vmatpush1.msra.mxu0 0.0
      %383 = vmatprep.subr.mxu0 0.0
      %384 = vmatpush1.msra.mxu0 0.0
      %385 = vmatprep.subr.mxu0 0.0
      %386 = vmatpush1.msra.mxu0 0.0
      %387 = vmatprep.subr.mxu0 0.0
      %388 = vmatpush1.msra.mxu0 0.0
      %389 = vmatprep.subr.mxu0 0.0
      %390 = vmatpush1.msra.mxu0 0.0
      %391 = vmatprep.subr.mxu0 0.0
      %392 = vmatpush1.msra.mxu0 0.0
      %393 = vmatprep.subr.mxu0 0.0
      %394 = vmatpush1.msra.mxu0 0.0
      %395 = vmatprep.subr.mxu0 0.0
      %396 = vmatpush1.msra.mxu0 0.0
      %397 = vmatprep.subr.mxu0 0.0
      %398 = vmatpush1.msra.mxu0 0.0
      %399 = vmatprep.subr.mxu0 0.0
      %400 = vmatpush1.msra.mxu0 0.0
      %401 = vmatprep.subr.mxu0 0.0
      %402 = vmatpush1.msra.mxu0 0.0
      %403 = vmatprep.subr.mxu0 0.0
      %404 = vmatpush1.msra.mxu0 0.0
      %405 = vmatprep.subr.mxu0 0.0
      %406 = vmatpush1.msra.mxu0 0.0
      %407 = vmatprep.subr.mxu0 0.0
      %408 = vmatpush1.msra.mxu0 0.0
      %409 = vmatprep.subr.mxu0 0.0
      %410 = vmatpush1.msra.mxu0 0.0
      %411 = vmatprep.subr.mxu0 0.0
      %412 = vmatpush1.msra.mxu0 0.0
      %413 = vmatprep.mubr.f32.mxu0 0.0
      %414 = vmatmul.mubr.f32.gmra.mrb[0].mxu0 %v243
      %v415 = vpop.f32.mrb[0].mxu0
      %v416 = vadd.f32 %v223, %v415
      %v417 = vpop.f32.mrb[0].mxu0
      %v418 = vadd.f32 %v223, %v417
      %419 = vdwg.mxu0
      %420 = vmatprep.subr.mxu0 %v256
      %421 = vmatpush1.msra.mxu0 %v254
      %422 = vmatprep.subr.mxu0 0.0
      %423 = vmatpush1.msra.mxu0 0.0
      %424 = vmatprep.subr.mxu0 0.0
      %425 = vmatpush1.msra.mxu0 0.0
      %426 = vmatprep.subr.mxu0 0.0
      %427 = vmatpush1.msra.mxu0 0.0
      %428 = vmatprep.subr.mxu0 0.0
      %429 = vmatpush1.msra.mxu0 0.0
      %430 = vmatprep.subr.mxu0 0.0
      %431 = vmatpush1.msra.mxu0 0.0
      %432 = vmatprep.subr.mxu0 0.0
      %433 = vmatpush1.msra.mxu0 0.0
      %434 = vmatprep.subr.mxu0 0.0
      %435 = vmatpush1.msra.mxu0 0.0
      %436 = vmatprep.subr.mxu0 0.0
      %437 = vmatpush1.msra.mxu0 0.0
      %438 = vmatprep.subr.mxu0 0.0
      %439 = vmatpush1.msra.mxu0 0.0
      %440 = vmatprep.subr.mxu0 0.0
      %441 = vmatpush1.msra.mxu0 0.0
      %442 = vmatprep.subr.mxu0 0.0
      %443 = vmatpush1.msra.mxu0 0.0
      %444 = vmatprep.subr.mxu0 0.0
      %445 = vmatpush1.msra.mxu0 0.0
      %446 = vmatprep.subr.mxu0 0.0
      %447 = vmatpush1.msra.mxu0 0.0
      %448 = vmatprep.subr.mxu0 0.0
      %449 = vmatpush1.msra.mxu0 0.0
      %450 = vmatprep.subr.mxu0 0.0
      %451 = vmatpush1.msra.mxu0 0.0
      %452 = vmatprep.subr.mxu0 0.0
      %453 = vmatpush1.msra.mxu0 0.0
      %454 = vmatprep.subr.mxu0 0.0
      %455 = vmatpush1.msra.mxu0 0.0
      %456 = vmatprep.subr.mxu0 0.0
      %457 = vmatpush1.msra.mxu0 0.0
      %458 = vmatprep.subr.mxu0 0.0
      %459 = vmatpush1.msra.mxu0 0.0
      %460 = vmatprep.subr.mxu0 0.0
      %461 = vmatpush1.msra.mxu0 0.0
      %462 = vmatprep.subr.mxu0 0.0
      %463 = vmatpush1.msra.mxu0 0.0
      %464 = vmatprep.subr.mxu0 0.0
      %465 = vmatpush1.msra.mxu0 0.0
      %466 = vmatprep.subr.mxu0 0.0
      %467 = vmatpush1.msra.mxu0 0.0
      %468 = vmatprep.subr.mxu0 0.0
      %469 = vmatpush1.msra.mxu0 0.0
      %470 = vmatprep.subr.mxu0 0.0
      %471 = vmatpush1.msra.mxu0 0.0
      %472 = vmatprep.subr.mxu0 0.0
      %473 = vmatpush1.msra.mxu0 0.0
      %474 = vmatprep.subr.mxu0 0.0
      %475 = vmatpush1.msra.mxu0 0.0
      %476 = vmatprep.subr.mxu0 0.0
      %477 = vmatpush1.msra.mxu0 0.0
      %478 = vmatprep.subr.mxu0 0.0
      %479 = vmatpush1.msra.mxu0 0.0
      %480 = vmatprep.subr.mxu0 0.0
      %481 = vmatpush1.msra.mxu0 0.0
      %482 = vmatprep.subr.mxu0 0.0
      %483 = vmatpush1.msra.mxu0 0.0
      %484 = vmatprep.mubr.f32.mxu0 0.0
      %485 = vmatmul.mubr.f32.gmra.mrb[0].mxu0 %v243
      %v486 = vpop.f32.mrb[0].mxu0
      %v487 = vadd.f32 %v223, %v486
      %v488 = vpop.f32.mrb[0].mxu0
      %v489 = vadd.f32 %v223, %v488
      %490 = vdwg.mxu0
      %491 = vmatprep.subr.mxu0 %v260
      %492 = vmatpush1.msra.mxu0 %v258
      %493 = vmatprep.subr.mxu0 0.0
      %494 = vmatpush1.msra.mxu0 0.0
      %495 = vmatprep.subr.mxu0 0.0
      %496 = vmatpush1.msra.mxu0 0.0
      %497 = vmatprep.subr.mxu0 0.0
      %498 = vmatpush1.msra.mxu0 0.0
      %499 = vmatprep.subr.mxu0 0.0
      %500 = vmatpush1.msra.mxu0 0.0
      %501 = vmatprep.subr.mxu0 0.0
      %502 = vmatpush1.msra.mxu0 0.0
      %503 = vmatprep.subr.mxu0 0.0
      %504 = vmatpush1.msra.mxu0 0.0
      %505 = vmatprep.subr.mxu0 0.0
      %506 = vmatpush1.msra.mxu0 0.0
      %507 = vmatprep.subr.mxu0 0.0
      %508 = vmatpush1.msra.mxu0 0.0
      %509 = vmatprep.subr.mxu0 0.0
      %510 = vmatpush1.msra.mxu0 0.0
      %511 = vmatprep.subr.mxu0 0.0
      %512 = vmatpush1.msra.mxu0 0.0
      %513 = vmatprep.subr.mxu0 0.0
      %514 = vmatpush1.msra.mxu0 0.0
      %515 = vmatprep.subr.mxu0 0.0
      %516 = vmatpush1.msra.mxu0 0.0
      %517 = vmatprep.subr.mxu0 0.0
      %518 = vmatpush1.msra.mxu0 0.0
      %519 = vmatprep.subr.mxu0 0.0
      %520 = vmatpush1.msra.mxu0 0.0
      %521 = vmatprep.subr.mxu0 0.0
      %522 = vmatpush1.msra.mxu0 0.0
      %523 = vmatprep.subr.mxu0 0.0
      %524 = vmatpush1.msra.mxu0 0.0
      %525 = vmatprep.subr.mxu0 0.0
      %526 = vmatpush1.msra.mxu0 0.0
      %527 = vmatprep.subr.mxu0 0.0
      %528 = vmatpush1.msra.mxu0 0.0
      %529 = vmatprep.subr.mxu0 0.0
      %530 = vmatpush1.msra.mxu0 0.0
      %531 = vmatprep.subr.mxu0 0.0
      %532 = vmatpush1.msra.mxu0 0.0
      %533 = vmatprep.subr.mxu0 0.0
      %534 = vmatpush1.msra.mxu0 0.0
      %535 = vmatprep.subr.mxu0 0.0
      %536 = vmatpush1.msra.mxu0 0.0
      %537 = vmatprep.subr.mxu0 0.0
      %538 = vmatpush1.msra.mxu0 0.0
      %539 = vmatprep.subr.mxu0 0.0
      %540 = vmatpush1.msra.mxu0 0.0
      %541 = vmatprep.subr.mxu0 0.0
      %542 = vmatpush1.msra.mxu0 0.0
      %543 = vmatprep.subr.mxu0 0.0
      %544 = vmatpush1.msra.mxu0 0.0
      %545 = vmatprep.subr.mxu0 0.0
      %546 = vmatpush1.msra.mxu0 0.0
      %547 = vmatprep.subr.mxu0 0.0
      %548 = vmatpush1.msra.mxu0 0.0
      %549 = vmatprep.subr.mxu0 0.0
      %550 = vmatpush1.msra.mxu0 0.0
      %551 = vmatprep.subr.mxu0 0.0
      %552 = vmatpush1.msra.mxu0 0.0
      %553 = vmatprep.subr.mxu0 0.0
      %554 = vmatpush1.msra.mxu0 0.0
      %555 = vmatprep.mubr.f32.mxu0 0.0
      %556 = vmatmul.mubr.f32.gmra.mrb[0].mxu0 %v243
      %v557 = vpop.f32.mrb[0].mxu0
      %v558 = vadd.f32 %v223, %v557
      %v559 = vpop.f32.mrb[0].mxu0
      %v560 = vadd.f32 %v223, %v559
      %561 = vdwg.mxu0
      %562 = vmatprep.subr.mxu0 %v264
      %563 = vmatpush1.msra.mxu0 %v262
      %564 = vmatprep.subr.mxu0 0.0
      %565 = vmatpush1.msra.mxu0 0.0
      %566 = vmatprep.subr.mxu0 0.0
      %567 = vmatpush1.msra.mxu0 0.0
      %568 = vmatprep.subr.mxu0 0.0
      %569 = vmatpush1.msra.mxu0 0.0
      %570 = vmatprep.subr.mxu0 0.0
      %571 = vmatpush1.msra.mxu0 0.0
      %572 = vmatprep.subr.mxu0 0.0
      %573 = vmatpush1.msra.mxu0 0.0
      %574 = vmatprep.subr.mxu0 0.0
      %575 = vmatpush1.msra.mxu0 0.0
      %576 = vmatprep.subr.mxu0 0.0
      %577 = vmatpush1.msra.mxu0 0.0
      %578 = vmatprep.subr.mxu0 0.0
      %579 = vmatpush1.msra.mxu0 0.0
      %580 = vmatprep.subr.mxu0 0.0
      %581 = vmatpush1.msra.mxu0 0.0
      %582 = vmatprep.subr.mxu0 0.0
      %583 = vmatpush1.msra.mxu0 0.0
      %584 = vmatprep.subr.mxu0 0.0
      %585 = vmatpush1.msra.mxu0 0.0
      %586 = vmatprep.subr.mxu0 0.0
      %587 = vmatpush1.msra.mxu0 0.0
      %588 = vmatprep.subr.mxu0 0.0
      %589 = vmatpush1.msra.mxu0 0.0
      %590 = vmatprep.subr.mxu0 0.0
      %591 = vmatpush1.msra.mxu0 0.0
      %592 = vmatprep.subr.mxu0 0.0
      %593 = vmatpush1.msra.mxu0 0.0
      %594 = vmatprep.subr.mxu0 0.0
      %595 = vmatpush1.msra.mxu0 0.0
      %596 = vmatprep.subr.mxu0 0.0
      %597 = vmatpush1.msra.mxu0 0.0
      %598 = vmatprep.subr.mxu0 0.0
      %599 = vmatpush1.msra.mxu0 0.0
      %600 = vmatprep.subr.mxu0 0.0
      %601 = vmatpush1.msra.mxu0 0.0
      %602 = vmatprep.subr.mxu0 0.0
      %603 = vmatpush1.msra.mxu0 0.0
      %604 = vmatprep.subr.mxu0 0.0
      %605 = vmatpush1.msra.mxu0 0.0
      %606 = vmatprep.subr.mxu0 0.0
      %607 = vmatpush1.msra.mxu0 0.0
      %608 = vmatprep.subr.mxu0 0.0
      %609 = vmatpush1.msra.mxu0 0.0
      %610 = vmatprep.subr.mxu0 0.0
      %611 = vmatpush1.msra.mxu0 0.0
      %612 = vmatprep.subr.mxu0 0.0
      %613 = vmatpush1.msra.mxu0 0.0
      %614 = vmatprep.subr.mxu0 0.0
      %615 = vmatpush1.msra.mxu0 0.0
      %616 = vmatprep.subr.mxu0 0.0
      %617 = vmatpush1.msra.mxu0 0.0
      %618 = vmatprep.subr.mxu0 0.0
      %619 = vmatpush1.msra.mxu0 0.0
      %620 = vmatprep.subr.mxu0 0.0
      %621 = vmatpush1.msra.mxu0 0.0
      %622 = vmatprep.subr.mxu0 0.0
      %623 = vmatpush1.msra.mxu0 0.0
      %624 = vmatprep.subr.mxu0 0.0
      %625 = vmatpush1.msra.mxu0 0.0
      %626 = vmatprep.mubr.f32.mxu0 0.0
      %627 = vmatmul.mubr.f32.gmra.mrb[0].mxu0 %v243
      %v628 = vpop.f32.mrb[0].mxu0
      %v629 = vadd.f32 %v223, %v628
      %v630 = vpop.f32.mrb[0].mxu0
      %v631 = vadd.f32 %v223, %v630
      %632 = vdwg.mxu0
      %633 = vmatprep.subr.mxu0 %v268
      %634 = vmatpush1.msra.mxu0 %v266
      %635 = vmatprep.subr.mxu0 0.0
      %636 = vmatpush1.msra.mxu0 0.0
      %637 = vmatprep.subr.mxu0 0.0
      %638 = vmatpush1.msra.mxu0 0.0
      %639 = vmatprep.subr.mxu0 0.0
      %640 = vmatpush1.msra.mxu0 0.0
      %641 = vmatprep.subr.mxu0 0.0
      %642 = vmatpush1.msra.mxu0 0.0
      %643 = vmatprep.subr.mxu0 0.0
      %644 = vmatpush1.msra.mxu0 0.0
      %645 = vmatprep.subr.mxu0 0.0
      %646 = vmatpush1.msra.mxu0 0.0
      %647 = vmatprep.subr.mxu0 0.0
      %648 = vmatpush1.msra.mxu0 0.0
      %649 = vmatprep.subr.mxu0 0.0
      %650 = vmatpush1.msra.mxu0 0.0
      %651 = vmatprep.subr.mxu0 0.0
      %652 = vmatpush1.msra.mxu0 0.0
      %653 = vmatprep.subr.mxu0 0.0
      %654 = vmatpush1.msra.mxu0 0.0
      %655 = vmatprep.subr.mxu0 0.0
      %656 = vmatpush1.msra.mxu0 0.0
      %657 = vmatprep.subr.mxu0 0.0
      %658 = vmatpush1.msra.mxu0 0.0
      %659 = vmatprep.subr.mxu0 0.0
      %660 = vmatpush1.msra.mxu0 0.0
      %661 = vmatprep.subr.mxu0 0.0
      %662 = vmatpush1.msra.mxu0 0.0
      %663 = vmatprep.subr.mxu0 0.0
      %664 = vmatpush1.msra.mxu0 0.0
      %665 = vmatprep.subr.mxu0 0.0
      %666 = vmatpush1.msra.mxu0 0.0
      %667 = vmatprep.subr.mxu0 0.0
      %668 = vmatpush1.msra.mxu0 0.0
      %669 = vmatprep.subr.mxu0 0.0
      %670 = vmatpush1.msra.mxu0 0.0
      %671 = vmatprep.subr.mxu0 0.0
      %672 = vmatpush1.msra.mxu0 0.0
      %673 = vmatprep.subr.mxu0 0.0
      %674 = vmatpush1.msra.mxu0 0.0
      %675 = vmatprep.subr.mxu0 0.0
      %676 = vmatpush1.msra.mxu0 0.0
      %677 = vmatprep.subr.mxu0 0.0
      %678 = vmatpush1.msra.mxu0 0.0
      %679 = vmatprep.subr.mxu0 0.0
      %680 = vmatpush1.msra.mxu0 0.0
      %681 = vmatprep.subr.mxu0 0.0
      %682 = vmatpush1.msra.mxu0 0.0
      %683 = vmatprep.subr.mxu0 0.0
      %684 = vmatpush1.msra.mxu0 0.0
      %685 = vmatprep.subr.mxu0 0.0
      %686 = vmatpush1.msra.mxu0 0.0
      %687 = vmatprep.subr.mxu0 0.0
      %688 = vmatpush1.msra.mxu0 0.0
      %689 = vmatprep.subr.mxu0 0.0
      %690 = vmatpush1.msra.mxu0 0.0
      %691 = vmatprep.subr.mxu0 0.0
      %692 = vmatpush1.msra.mxu0 0.0
      %693 = vmatprep.subr.mxu0 0.0
      %694 = vmatpush1.msra.mxu0 0.0
      %695 = vmatprep.subr.mxu0 0.0
      %696 = vmatpush1.msra.mxu0 0.0
      %697 = vmatprep.mubr.f32.mxu0 0.0
      %698 = vmatmul.mubr.f32.gmra.mrb[0].mxu0 %v243
      %v699 = vpop.f32.mrb[0].mxu0
      %v700 = vadd.f32 %v223, %v699
      %v701 = vpop.f32.mrb[0].mxu0
      %v702 = vadd.f32 %v223, %v701
      %703 = vdwg.mxu0
      %704 = vmatprep.subr.mxu0 %v272
      %705 = vmatpush1.msra.mxu0 %v270
      %706 = vmatprep.subr.mxu0 0.0
      %707 = vmatpush1.msra.mxu0 0.0
      %708 = vmatprep.subr.mxu0 0.0
      %709 = vmatpush1.msra.mxu0 0.0
      %710 = vmatprep.subr.mxu0 0.0
      %711 = vmatpush1.msra.mxu0 0.0
      %712 = vmatprep.subr.mxu0 0.0
      %713 = vmatpush1.msra.mxu0 0.0
      %714 = vmatprep.subr.mxu0 0.0
      %715 = vmatpush1.msra.mxu0 0.0
      %716 = vmatprep.subr.mxu0 0.0
      %717 = vmatpush1.msra.mxu0 0.0
      %718 = vmatprep.subr.mxu0 0.0
      %719 = vmatpush1.msra.mxu0 0.0
      %720 = vmatprep.subr.mxu0 0.0
      %721 = vmatpush1.msra.mxu0 0.0
      %722 = vmatprep.subr.mxu0 0.0
      %723 = vmatpush1.msra.mxu0 0.0
      %724 = vmatprep.subr.mxu0 0.0
      %725 = vmatpush1.msra.mxu0 0.0
      %726 = vmatprep.subr.mxu0 0.0
      %727 = vmatpush1.msra.mxu0 0.0
      %728 = vmatprep.subr.mxu0 0.0
      %729 = vmatpush1.msra.mxu0 0.0
      %730 = vmatprep.subr.mxu0 0.0
      %731 = vmatpush1.msra.mxu0 0.0
      %732 = vmatprep.subr.mxu0 0.0
      %733 = vmatpush1.msra.mxu0 0.0
      %734 = vmatprep.subr.mxu0 0.0
      %735 = vmatpush1.msra.mxu0 0.0
      %736 = vmatprep.subr.mxu0 0.0
      %737 = vmatpush1.msra.mxu0 0.0
      %738 = vmatprep.subr.mxu0 0.0
      %739 = vmatpush1.msra.mxu0 0.0
      %740 = vmatprep.subr.mxu0 0.0
      %741 = vmatpush1.msra.mxu0 0.0
      %742 = vmatprep.subr.mxu0 0.0
      %743 = vmatpush1.msra.mxu0 0.0
      %744 = vmatprep.subr.mxu0 0.0
      %745 = vmatpush1.msra.mxu0 0.0
      %746 = vmatprep.subr.mxu0 0.0
      %747 = vmatpush1.msra.mxu0 0.0
      %748 = vmatprep.subr.mxu0 0.0
      %749 = vmatpush1.msra.mxu0 0.0
      %750 = vmatprep.subr.mxu0 0.0
      %751 = vmatpush1.msra.mxu0 0.0
      %752 = vmatprep.subr.mxu0 0.0
      %753 = vmatpush1.msra.mxu0 0.0
      %754 = vmatprep.subr.mxu0 0.0
      %755 = vmatpush1.msra.mxu0 0.0
      %756 = vmatprep.subr.mxu0 0.0
      %757 = vmatpush1.msra.mxu0 0.0
      %758 = vmatprep.subr.mxu0 0.0
      %759 = vmatpush1.msra.mxu0 0.0
      %760 = vmatprep.subr.mxu0 0.0
      %761 = vmatpush1.msra.mxu0 0.0
      %762 = vmatprep.subr.mxu0 0.0
      %763 = vmatpush1.msra.mxu0 0.0
      %764 = vmatprep.subr.mxu0 0.0
      %765 = vmatpush1.msra.mxu0 0.0
      %766 = vmatprep.subr.mxu0 0.0
      %767 = vmatpush1.msra.mxu0 0.0
      %768 = vmatprep.mubr.f32.mxu0 0.0
      %769 = vmatmul.mubr.f32.gmra.mrb[0].mxu0 %v243
      %v770 = vpop.f32.mrb[0].mxu0
      %v771 = vadd.f32 %v223, %v770
      %v772 = vpop.f32.mrb[0].mxu0
      %v773 = vadd.f32 %v223, %v772
      %774 = vdwg.mxu0
      %775 = vmatprep.subr.mxu0 %v276
      %776 = vmatpush1.msra.mxu0 %v274
      %777 = vmatprep.subr.mxu0 0.0
      %778 = vmatpush1.msra.mxu0 0.0
      %779 = vmatprep.subr.mxu0 0.0
      %780 = vmatpush1.msra.mxu0 0.0
      %781 = vmatprep.subr.mxu0 0.0
      %782 = vmatpush1.msra.mxu0 0.0
      %783 = vmatprep.subr.mxu0 0.0
      %784 = vmatpush1.msra.mxu0 0.0
      %785 = vmatprep.subr.mxu0 0.0
      %786 = vmatpush1.msra.mxu0 0.0
      %787 = vmatprep.subr.mxu0 0.0
      %788 = vmatpush1.msra.mxu0 0.0
      %789 = vmatprep.subr.mxu0 0.0
      %790 = vmatpush1.msra.mxu0 0.0
      %791 = vmatprep.subr.mxu0 0.0
      %792 = vmatpush1.msra.mxu0 0.0
      %793 = vmatprep.subr.mxu0 0.0
      %794 = vmatpush1.msra.mxu0 0.0
      %795 = vmatprep.subr.mxu0 0.0
      %796 = vmatpush1.msra.mxu0 0.0
      %797 = vmatprep.subr.mxu0 0.0
      %798 = vmatpush1.msra.mxu0 0.0
      %799 = vmatprep.subr.mxu0 0.0
      %800 = vmatpush1.msra.mxu0 0.0
      %801 = vmatprep.subr.mxu0 0.0
      %802 = vmatpush1.msra.mxu0 0.0
      %803 = vmatprep.subr.mxu0 0.0
      %804 = vmatpush1.msra.mxu0 0.0
      %805 = vmatprep.subr.mxu0 0.0
      %806 = vmatpush1.msra.mxu0 0.0
      %807 = vmatprep.subr.mxu0 0.0
      %808 = vmatpush1.msra.mxu0 0.0
      %809 = vmatprep.subr.mxu0 0.0
      %810 = vmatpush1.msra.mxu0 0.0
      %811 = vmatprep.subr.mxu0 0.0
      %812 = vmatpush1.msra.mxu0 0.0
      %813 = vmatprep.subr.mxu0 0.0
      %814 = vmatpush1.msra.mxu0 0.0
      %815 = vmatprep.subr.mxu0 0.0
      %816 = vmatpush1.msra.mxu0 0.0
      %817 = vmatprep.subr.mxu0 0.0
      %818 = vmatpush1.msra.mxu0 0.0
      %819 = vmatprep.subr.mxu0 0.0
      %820 = vmatpush1.msra.mxu0 0.0
      %821 = vmatprep.subr.mxu0 0.0
      %822 = vmatpush1.msra.mxu0 0.0
      %823 = vmatprep.subr.mxu0 0.0
      %824 = vmatpush1.msra.mxu0 0.0
      %825 = vmatprep.subr.mxu0 0.0
      %826 = vmatpush1.msra.mxu0 0.0
      %827 = vmatprep.subr.mxu0 0.0
      %828 = vmatpush1.msra.mxu0 0.0
      %829 = vmatprep.subr.mxu0 0.0
      %830 = vmatpush1.msra.mxu0 0.0
      %831 = vmatprep.subr.mxu0 0.0
      %832 = vmatpush1.msra.mxu0 0.0
      %833 = vmatprep.subr.mxu0 0.0
      %834 = vmatpush1.msra.mxu0 0.0
      %835 = vmatprep.subr.mxu0 0.0
      %836 = vmatpush1.msra.mxu0 0.0
      %837 = vmatprep.subr.mxu0 0.0
      %838 = vmatpush1.msra.mxu0 0.0
      %839 = vmatprep.mubr.f32.mxu0 0.0
      %840 = vmatmul.mubr.f32.gmra.mrb[0].mxu0 %v243
      %v841 = vpop.f32.mrb[0].mxu0
      %v842 = vadd.f32 %v223, %v841
      %v843 = vpop.f32.mrb[0].mxu0
      %v844 = vadd.f32 %v223, %v843
      %845 = vdwg.mxu0
      %v846 = vmul.f32 %v345, 0.5
      %v847 = vmul.f32 %v347, 0.5
      %v848 = vmul.f32 %v416, 0.5
      %v849 = vmul.f32 %v418, 0.5
      %v850 = vmul.f32 %v487, 0.5
      %v851 = vmul.f32 %v489, 0.5
      %v852 = vmul.f32 %v558, 0.5
      %v853 = vmul.f32 %v560, 0.5
      %v854 = vmul.f32 %v629, 0.5
      %v855 = vmul.f32 %v631, 0.5
      %v856 = vmul.f32 %v700, 0.5
      %v857 = vmul.f32 %v702, 0.5
      %v858 = vmul.f32 %v771, 0.5
      %v859 = vmul.f32 %v773, 0.5
      %v860 = vmul.f32 %v842, 0.5
      %v861 = vmul.f32 %v844, 0.5
      %v862 = vtanh.pop %v846
      %v863 = vtanh.pop %v847
      %v864 = vtanh.pop %v848
      %v865 = vtanh.pop %v849
      %v866 = vtanh.pop %v850
      %v867 = vtanh.pop %v851
      %v868 = vtanh.pop %v852
      %v869 = vtanh.pop %v853
      %v870 = vtanh.pop %v854
      %v871 = vtanh.pop %v855
      %v872 = vtanh.pop %v856
      %v873 = vtanh.pop %v857
      %v874 = vtanh.pop %v858
      %v875 = vtanh.pop %v859
      %v876 = vtanh.pop %v860
      %v877 = vtanh.pop %v861
      %v878 = vadd.f32 %v862, 1.0
      %v879 = vadd.f32 %v863, 1.0
      %v880 = vadd.f32 %v864, 1.0
      %v881 = vadd.f32 %v865, 1.0
      %v882 = vadd.f32 %v866, 1.0
      %v883 = vadd.f32 %v867, 1.0
      %v884 = vadd.f32 %v868, 1.0
      %v885 = vadd.f32 %v869, 1.0
      %v886 = vadd.f32 %v870, 1.0
      %v887 = vadd.f32 %v871, 1.0
      %v888 = vadd.f32 %v872, 1.0
      %v889 = vadd.f32 %v873, 1.0
      %v890 = vadd.f32 %v874, 1.0
      %v891 = vadd.f32 %v875, 1.0
      %v892 = vadd.f32 %v876, 1.0
      %v893 = vadd.f32 %v877, 1.0
      %v894 = vmul.f32 %v878, 0.5
      %v895 = vmul.f32 %v879, 0.5
      %v896 = vmul.f32 %v880, 0.5
      %v897 = vmul.f32 %v881, 0.5
      %v898 = vmul.f32 %v882, 0.5
      %v899 = vmul.f32 %v883, 0.5
      %v900 = vmul.f32 %v884, 0.5
      %v901 = vmul.f32 %v885, 0.5
      %v902 = vmul.f32 %v886, 0.5
      %v903 = vmul.f32 %v887, 0.5
      %v904 = vmul.f32 %v888, 0.5
      %v905 = vmul.f32 %v889, 0.5
      %v906 = vmul.f32 %v890, 0.5
      %v907 = vmul.f32 %v891, 0.5
      %v908 = vmul.f32 %v892, 0.5
      %v909 = vmul.f32 %v893, 0.5
      %v926 = vcombine.low %v894, %v895
      %v927 = vcombine.low %v896, %v897
      %v929 = vunpack.c.l.s4 1983009808
      %v930 = vunpack.c.0.s8 %v929
      %v931 = vlaneseq
      %v932 = vshrl.u32 %v931, 7
      %v933 = vsub.s32 %v930, %v932
      %v934 = vrot.slane %v926, %v933
      %v936 = vunpack.c.l.s4 1983009808
      %v937 = vunpack.c.0.s8 %v936
      %v938 = vlaneseq
      %v939 = vshrl.u32 %v938, 7
      %v940 = vsub.s32 %v937, %v939
      %v941 = vrot.slane %v927, %v940
      %v942 = vcombine.low %v934, %v941
      %v943 = vcombine.low %v898, %v899
      %v944 = vcombine.low %v900, %v901
      %v946 = vunpack.c.l.s4 1983009808
      %v947 = vunpack.c.0.s8 %v946
      %v948 = vlaneseq
      %v949 = vshrl.u32 %v948, 7
      %v950 = vsub.s32 %v947, %v949
      %v951 = vrot.slane %v943, %v950
      %v953 = vunpack.c.l.s4 1983009808
      %v954 = vunpack.c.0.s8 %v953
      %v955 = vlaneseq
      %v956 = vshrl.u32 %v955, 7
      %v957 = vsub.s32 %v954, %v956
      %v958 = vrot.slane %v944, %v957
      %v959 = vcombine.low %v951, %v958
      %v960 = vcombine.low %v902, %v903
      %v961 = vcombine.low %v904, %v905
      %v963 = vunpack.c.l.s4 1983009808
      %v964 = vunpack.c.0.s8 %v963
      %v965 = vlaneseq
      %v966 = vshrl.u32 %v965, 7
      %v967 = vsub.s32 %v964, %v966
      %v968 = vrot.slane %v960, %v967
      %v970 = vunpack.c.l.s4 1983009808
      %v971 = vunpack.c.0.s8 %v970
      %v972 = vlaneseq
      %v973 = vshrl.u32 %v972, 7
      %v974 = vsub.s32 %v971, %v973
      %v975 = vrot.slane %v961, %v974
      %v976 = vcombine.low %v968, %v975
      %v977 = vcombine.low %v906, %v907
      %v978 = vcombine.low %v908, %v909
      %v980 = vunpack.c.l.s4 1983009808
      %v981 = vunpack.c.0.s8 %v980
      %v982 = vlaneseq
      %v983 = vshrl.u32 %v982, 7
      %v984 = vsub.s32 %v981, %v983
      %v985 = vrot.slane %v977, %v984
      %v987 = vunpack.c.l.s4 1983009808
      %v988 = vunpack.c.0.s8 %v987
      %v989 = vlaneseq
      %v990 = vshrl.u32 %v989, 7
      %v991 = vsub.s32 %v988, %v990
      %v992 = vrot.slane %v978, %v991
      %v993 = vcombine.low %v985, %v992
      %998 = vst [vmem:[%s208] sm:$0xff] %v942
      %999 = vst [vmem:[%s208 + $0x8] sm:$0xff] %v959
      %1000 = vst [vmem:[%s208 + $0x10] sm:$0xff] %v976
      %1001 = vst [vmem:[%s208 + $0x18] sm:$0xff] %v993
      %s1002 = smul.u32 16, %s19
      %p1003 = scmp.lt.s32.totalorder %s18, 1
      %s1004 = scalar_select %p1003, %s18, 1
      %p1005 = scmp.lt.s32.totalorder %s1002, 31
      %s1006 = scalar_select %p1005, %s1002, 31
      %s1007 = smul.addr %s1004, 32
      %s1008 = sadd.s32 %s1006, %s1007
      %s1009 = smul.addr %s1008, 2
      %s1010 = scalar_lea.vmem %s3, %s1009
      // Predicated region
      $region33: #{out_conv_forward.1} parent=31 // pred_check
        %p1011 = pneg %p116
      $region34: #{out_conv_forward.1} parent=31 // pred_check_branch
        %1013 = sbr.rel (%p1011) target = $region36
      $region35: #{out_conv_forward.1} parent=31 // pred_region
        %s1014 = smul.u32 16, %s19
      $region36: #{out_conv_forward.1} parent=31 // pred_fallthru
        _
    $region32: #{out_conv_forward.1} parent=5 // pred_fallthru
      _
    %p1015 = scmp.le.s32.totalorder 2, %s9
    // Predicated region
    $region37: #{out_conv_forward.1} parent=5 // pred_check
      %p1016 = pneg %p1015
    $region38: #{out_conv_forward.1} parent=5 // pred_check_branch
      %1018 = sbr.rel (%p1016) target = $region40
    $region39: #{out_conv_forward.1} parent=5 // pred_region
      %s1019 = ssub.s32 %s9, 2
      // Predicated region
      $region41: #{out_conv_forward.1} parent=39 // pred_check
        %p1020 = pneg %p122
      $region42: #{out_conv_forward.1} parent=39 // pred_check_branch
        %1022 = sbr.rel (%p1020) target = $region44
      $region43: #{out_conv_forward.1} parent=39 // pred_region
        %s1023 = smul.u32 16, %s21
        %p1024 = scmp.lt.s32.totalorder %s20, 1
        %s1025 = scalar_select %p1024, %s20, 1
        %p1026 = scmp.lt.s32.totalorder %s1023, 31
        %s1027 = scalar_select %p1026, %s1023, 31
        %s1028 = smul.addr %s1025, 32
        %s1029 = sadd.s32 %s1027, %s1028
        %s1030 = smul.addr %s1029, 2
        %s1031 = scalar_lea.vmem %s3, %s1030
      $region44: #{out_conv_forward.1} parent=39 // pred_fallthru
        _
    $region40: #{out_conv_forward.1} parent=5 // pred_fallthru
      _
  $region6: #{out_conv_forward.1} parent=0 // loop_footer
    %s13 = sadd.s32 1, %s9
  $region7: #{out_conv_forward.1} parent=0 // loop_footer_branch
    %8 = sbr.rel target = $region3
  $region8: #{out_conv_forward.1} parent=0 // loop_exit
    _

</llo_original>
